<compile_context>
chip_gen: v7x
topology: tpu7x:2x2x1
jax: 0.10.0
libtpu: 0.0.40
codegen_flags: <defaults>
</compile_context>

<pallas_src>
import functools

import jax
import jax.numpy as jnp
from jax.experimental import pallas as pl
from jax.experimental.pallas import tpu as pltpu


# ---------------------------------------------------------------------------
# Shared in-kernel attention math (tiny: operates on (C,1)/(d,1) columns).
# ---------------------------------------------------------------------------
def _attention_weights(s, wfc_ref, bn_scale_ref, bn_shift_ref, wa_ref, ba_ref):
    """s: (C,1) pooled mean.  Returns list of M (C,1) softmax attention cols."""
    M = wa_ref.shape[0]
    # fc: 1x1 conv (matmul, no bias) + folded BN + ReLU -> (d, 1)
    z = jnp.dot(wfc_ref[...], s, preferred_element_type=jnp.float32)
    z = jnp.maximum(z * bn_scale_ref[...] + bn_shift_ref[...], 0.0)
    # per-branch 1x1 convs -> attention logits (C, 1) each
    logits = [
        jnp.dot(wa_ref[m], z, preferred_element_type=jnp.float32) + ba_ref[m]
        for m in range(M)
    ]
    # numerically stable softmax over the branch axis
    mmax = logits[0]
    for m in range(1, M):
        mmax = jnp.maximum(mmax, logits[m])
    exps = [jnp.exp(l - mmax) for l in logits]
    denom = exps[0]
    for m in range(1, M):
        denom = denom + exps[m]
    # EUP approximate reciprocal (free co-issue slot).  The approximation is a
    # common multiplicative factor on all branch weights, so the induced error
    # on the output is a small pure relative scale (covered by test rtol).
    inv = pl.reciprocal(denom, approx=True)
    return [e * inv for e in exps]


# ---------------------------------------------------------------------------
# Path 1: fused single-pass kernel (whole image per batch).
# ---------------------------------------------------------------------------
def emb_fused_kernel(inv_hw, *refs):
    # refs = (f_1,...,f_M, wfc, bn_scale, bn_shift, wa, ba, out)
    *f_refs, wfc_ref, bns_ref, bnb_ref, wa_ref, ba_ref, out_ref = refs
    M = wa_ref.shape[0]

    # Global average pool of the branch sum: reduce each branch over HW
    # directly from its ref (no cached (C,HW) temporaries, no explicit U).
    s = jnp.sum(f_refs[0][0].astype(jnp.float32), axis=1, keepdims=True)
    for m in range(1, M):
        s = s + jnp.sum(f_refs[m][0].astype(jnp.float32), axis=1, keepdims=True)
    s = s * inv_hw                                            # (C, 1) mean

    a = _attention_weights(s, wfc_ref, bns_ref, bnb_ref, wa_ref, ba_ref)

    # Weighted sum of branches, re-reading the branch refs (kernel is
    # HBM-bound, not vld-bound).
    acc = f_refs[0][0].astype(jnp.float32) * a[0]
    for m in range(1, M):
        acc = acc + f_refs[m][0].astype(jnp.float32) * a[m]
    out_ref[0] = acc.astype(out_ref.dtype)


# ---------------------------------------------------------------------------
# Path 2a: tiled pooling + attention kernel.  grid = (B, n_tiles),
# tile axis last and "arbitrary" (reduction); pooled sum lives in VMEM scratch.
# ---------------------------------------------------------------------------
def emb_pool_attn_kernel(inv_hw, *refs):
    # refs = (f_1,...,f_M, wfc, bn_scale, bn_shift, wa, ba, attn_out, s_acc)
    *f_refs, wfc_ref, bns_ref, bnb_ref, wa_ref, ba_ref, attn_ref, s_acc = refs
    M = wa_ref.shape[0]
    t = pl.program_id(1)

    @pl.when(t == 0)
    def _():
        s_acc[...] = jnp.zeros_like(s_acc)

    part = jnp.sum(f_refs[0][0].astype(jnp.float32), axis=1, keepdims=True)
    for m in range(1, M):
        part = part + jnp.sum(f_refs[m][0].astype(jnp.float32), axis=1,
                              keepdims=True)
    s_acc[...] += part

    @pl.when(t == pl.num_programs(1) - 1)
    def _():
        a = _attention_weights(s_acc[...] * inv_hw, wfc_ref, bns_ref, bnb_ref,
                               wa_ref, ba_ref)
        for m in range(M):
            attn_ref[0, m] = a[m]


# ---------------------------------------------------------------------------
# Path 2b: tiled apply kernel.  grid = (B, n_tiles), both axes "parallel"
# (v7x megacore load-balancing, lane-dense >=128-wide output stores).
# ---------------------------------------------------------------------------
def emb_apply_kernel(attn_ref, *refs):
    # refs = (f_1,...,f_M, out)
    *f_refs, out_ref = refs
    M = attn_ref.shape[1]
    acc = f_refs[0][0].astype(jnp.float32) * attn_ref[0, 0]
    for m in range(1, M):
        acc = acc + f_refs[m][0].astype(jnp.float32) * attn_ref[0, m]
    out_ref[0] = acc.astype(out_ref.dtype)


# ---------------------------------------------------------------------------
# Wrapper.
# ---------------------------------------------------------------------------
def _pick_hw_tile(HW, C, M, itemsize, budget_bytes=16 * 1024 * 1024):
    """Largest spatial tile (multiple of 128 dividing HW) whose double-buffered
    (M inputs + 1 output) blocks fit the VMEM budget."""
    per_lane = (M + 1) * C * itemsize * 2          # dbl-buffered in+out columns
    cap = max(128, (budget_bytes // per_lane) // 128 * 128)
    if HW <= cap:
        return HW
    t = cap
    while t >= 128:
        if HW % t == 0:
            return t
        t -= 128
    return HW  # TODO(synk): pad/mask path for HW not a multiple of 128


def emb_forward(f1, f2, wfc, bn_scale, bn_shift, wa, ba, f3=None, f4=None,
                *, hw_tile=None, fused_vmem_budget_bytes=24 * 1024 * 1024):
    """f1..fM: (B, C, H, W).  Returns (B, C, H, W) in the input dtype."""
    feats = [f for f in (f1, f2, f3, f4) if f is not None]
    M = int(wa.shape[0])
    assert len(feats) == M, f"got {len(feats)} feature maps but M={M}"

    B, C, H, W = f1.shape
    d = int(wfc.shape[0])
    HW = H * W
    dtype = f1.dtype
    itemsize = jnp.dtype(dtype).itemsize
    inv_hw = 1.0 / float(HW)

    # Metadata-only reshape (no HBM copy); keep the native activation dtype
    # (bf16 inputs stay bf16 on the wire, upcast to f32 in VMEM).
    feats2d = [f.reshape(B, C, HW) for f in feats]

    wfc = wfc.astype(jnp.float32).reshape(d, C)
    bn_scale = bn_scale.astype(jnp.float32).reshape(d, 1)
    bn_shift = bn_shift.astype(jnp.float32).reshape(d, 1)
    wa = wa.astype(jnp.float32).reshape(M, C, d)
    ba = ba.astype(jnp.float32).reshape(M, C, 1)

    param_specs = [
        pl.BlockSpec((d, C), lambda *_: (0, 0)),
        pl.BlockSpec((d, 1), lambda *_: (0, 0)),
        pl.BlockSpec((d, 1), lambda *_: (0, 0)),
        pl.BlockSpec((M, C, d), lambda *_: (0, 0, 0)),
        pl.BlockSpec((M, C, 1), lambda *_: (0, 0, 0)),
    ]
    param_bytes = 4 * (d * C + 2 * d + M * C * d + M * C)

    def _vmem_limit(block_bytes):
        # explicit scoped-VMEM budget: blocks + params + headroom, clamped so
        # it is valid on every generation (v7x has 64 MiB physical VMEM).
        return int(min(56 * 1024 * 1024,
                       max(16 * 1024 * 1024,
                           block_bytes + param_bytes + 4 * 1024 * 1024)))

    fused_block_bytes = (M + 1) * C * HW * itemsize * 2   # dbl-buffered in+out

    # ---- Path 1: fused single pass (minimal HBM traffic) -------------------
    if hw_tile is None and fused_block_bytes <= fused_vmem_budget_bytes:
        out = pl.pallas_call(
            functools.partial(emb_fused_kernel, inv_hw),
            out_shape=jax.ShapeDtypeStruct((B, C, HW), dtype),
            grid=(B,),
            in_specs=(
                [pl.BlockSpec((1, C, HW), lambda b: (b, 0, 0)) for _ in range(M)]
                + param_specs),
            out_specs=pl.BlockSpec((1, C, HW), lambda b: (b, 0, 0)),
            compiler_params=pltpu.CompilerParams(
                dimension_semantics=("parallel",),
                vmem_limit_bytes=_vmem_limit(fused_block_bytes)),
        )(*feats2d, wfc, bn_scale, bn_shift, wa, ba)
        return out.reshape(B, C, H, W)

    # ---- Path 2: spatially tiled two-phase ----------------------------------
    t = hw_tile if hw_tile is not None else _pick_hw_tile(HW, C, M, itemsize)
    assert HW % t == 0 and (t == HW or t % 128 == 0), \
        f"hw_tile={t} must divide HW={HW} and be a multiple of 128 (or == HW)"
    nT = HW // t
    tile_block_bytes = (M + 1) * C * t * itemsize * 2
    vmem_limit = _vmem_limit(tile_block_bytes)

    # Phase 1: GAP over spatial tiles + fc/BN/ReLU + branch logits + softmax.
    attn = pl.pallas_call(
        functools.partial(emb_pool_attn_kernel, inv_hw),
        out_shape=jax.ShapeDtypeStruct((B, M, C, 1), jnp.float32),
        grid=(B, nT),
        in_specs=(
            [pl.BlockSpec((1, C, t), lambda b, j: (b, 0, j)) for _ in range(M)]
            + param_specs),
        out_specs=pl.BlockSpec((1, M, C, 1), lambda b, j: (b, 0, 0, 0)),
        scratch_shapes=[pltpu.VMEM((C, 1), jnp.float32)],
        compiler_params=pltpu.CompilerParams(
            dimension_semantics=("parallel", "arbitrary"),
            vmem_limit_bytes=vmem_limit),
    )(*feats2d, wfc, bn_scale, bn_shift, wa, ba)

    # Phase 2: weighted branch sum, fully parallel over (B, spatial tiles).
    out = pl.pallas_call(
        emb_apply_kernel,
        out_shape=jax.ShapeDtypeStruct((B, C, HW), dtype),
        grid=(B, nT),
        in_specs=(
            [pl.BlockSpec((1, M, C, 1), lambda b, j: (b, 0, 0, 0))]
            + [pl.BlockSpec((1, C, t), lambda b, j: (b, 0, j)) for _ in range(M)]),
        out_specs=pl.BlockSpec((1, C, t), lambda b, j: (b, 0, j)),
        compiler_params=pltpu.CompilerParams(
            dimension_semantics=("parallel", "parallel"),
            vmem_limit_bytes=vmem_limit),
    )(attn, *feats2d)
    return out.reshape(B, C, H, W)


# ---------------------------------------------------------------------------
# Pure-JAX reference (eval-mode BN), mirrors the PyTorch forward.
# ---------------------------------------------------------------------------
def emb_reference(feats_list, wfc, bn_scale, bn_shift, wa, ba):
    feats = jnp.stack(feats_list, axis=1)                     # (B, M, C, H, W)
    u = feats.sum(axis=1)                                     # (B, C, H, W)
    s = u.mean(axis=(2, 3))                                   # (B, C)
    z = s @ wfc.T                                             # (B, d)
    z = jnp.maximum(z * bn_scale[:, 0] + bn_shift[:, 0], 0.0)
    logits = jnp.einsum('mcd,bd->bmc', wa, z) + ba[None, :, :, 0]  # (B, M, C)
    a = jax.nn.softmax(logits, axis=1)
    return (feats * a[:, :, :, None, None]).sum(axis=1)


if __name__ == "__main__":
    key = jax.random.PRNGKey(0)
    B, C, H, W = 2, 4, 16, 16        # features = C = 4
    M = 2
    d = C // 2

    ks = jax.random.split(key, 9)
    f1 = jax.random.normal(ks[0], (B, C, H, W), dtype=jnp.float32)
    f2 = jax.random.normal(ks[1], (B, C, H, W), dtype=jnp.float32)

    # fc: Conv2d(C -> d, 1x1, bias=False) weight
    wfc = 0.2 * jax.random.normal(ks[2], (d, C), dtype=jnp.float32)
    # BatchNorm2d(d) parameters, folded (eval mode)
    gamma = 1.0 + 0.1 * jax.random.normal(ks[3], (d,), dtype=jnp.float32)
    beta = 0.1 * jax.random.normal(ks[4], (d,), dtype=jnp.float32)
    run_mean = 0.1 * jax.random.normal(ks[5], (d,), dtype=jnp.float32)
    run_var = jnp.abs(1.0 + 0.1 * jax.random.normal(ks[6], (d,),
                                                    dtype=jnp.float32))
    eps = 1e-5
    bn_scale = (gamma / jnp.sqrt(run_var + eps)).reshape(d, 1)
    bn_shift = (beta - run_mean * bn_scale[:, 0]).reshape(d, 1)

    # fcs: M x Conv2d(d -> C, 1x1, bias=True)
    wa = 0.2 * jax.random.normal(ks[7], (M, C, d), dtype=jnp.float32)
    ba = 0.1 * jax.random.normal(ks[8], (M, C, 1), dtype=jnp.float32)

    ref = emb_reference([f1, f2], wfc, bn_scale, bn_shift, wa, ba)

    # Tolerances: approx-reciprocal softmax introduces a tiny common relative
    # scale on the output -> compare with rtol, tight atol.
    RTOL, ATOL = 1e-2, 1e-4

    # Path 1: fused single-pass kernel (auto-selected for small C*HW).
    out_fused = jax.block_until_ready(
        emb_forward(f1, f2, wfc, bn_scale, bn_shift, wa, ba))
    assert out_fused.shape == (B, C, H, W)
    assert jnp.allclose(out_fused, ref, rtol=RTOL, atol=ATOL), \
        "fused path mismatch vs reference"

    # Path 2: spatially tiled two-phase path (forced via hw_tile=128) —
    # exercises the pooled-accumulator and parallel apply kernels used for
    # large C*HW / v7x VMEM budgets.
    out_tiled = jax.block_until_ready(
        emb_forward(f1, f2, wfc, bn_scale, bn_shift, wa, ba, hw_tile=128))
    assert out_tiled.shape == (B, C, H, W)
    assert jnp.allclose(out_tiled, ref, rtol=RTOL, atol=ATOL), \
        "tiled path mismatch vs reference"

    print("KERNEL_OK")
</pallas_src>

<mosaic_0001>
module attributes {stable_mosaic.version = 11 : i64} {
  func.func @emb_fused_kernel(%arg0: i32, %arg1: memref<1x4x256xf32, #tpu.memory_space<vmem>>, %arg2: memref<1x4x256xf32, #tpu.memory_space<vmem>>, %arg3: memref<2x4xf32, #tpu.memory_space<vmem>>, %arg4: memref<2x1xf32, #tpu.memory_space<vmem>>, %arg5: memref<2x1xf32, #tpu.memory_space<vmem>>, %arg6: memref<2x4x2xf32, #tpu.memory_space<vmem>>, %arg7: memref<2x4x1xf32, #tpu.memory_space<vmem>>, %arg8: memref<1x4x256xf32, #tpu.memory_space<vmem>>) attributes {dimension_semantics = [#tpu.dimension_semantics<parallel>], iteration_bounds = array<i64: 2>, scalar_prefetch = 0 : i64, scratch_operands = 0 : i64, tpu.core_type = #tpu.core_type<tc>, window_params = [{transform_indices = @transform_0, window_bounds = array<i64: 1, 4, 256>}, {transform_indices = @transform_1, window_bounds = array<i64: 1, 4, 256>}, {pipeline_mode = #tpu.pipeline_mode<synchronous>, transform_indices = @transform_2, window_bounds = array<i64: 2, 4>}, {pipeline_mode = #tpu.pipeline_mode<synchronous>, transform_indices = @transform_3, window_bounds = array<i64: 2, 1>}, {pipeline_mode = #tpu.pipeline_mode<synchronous>, transform_indices = @transform_4, window_bounds = array<i64: 2, 1>}, {pipeline_mode = #tpu.pipeline_mode<synchronous>, transform_indices = @transform_5, window_bounds = array<i64: 2, 4, 2>}, {pipeline_mode = #tpu.pipeline_mode<synchronous>, transform_indices = @transform_6, window_bounds = array<i64: 2, 4, 1>}, {transform_indices = @transform_7, window_bounds = array<i64: 1, 4, 256>}]} {
    %c0 = arith.constant 0 : index
    %c0_0 = arith.constant 0 : index
    %c0_1 = arith.constant 0 : index
    %0 = vector.load %arg1[%c0, %c0_0, %c0_1] : memref<1x4x256xf32, #tpu.memory_space<vmem>>, vector<1x4x256xf32>
    %1 = vector.shape_cast %0 : vector<1x4x256xf32> to vector<4x256xf32>
    %cst = arith.constant dense<0.000000e+00> : vector<4xf32>
    %2 = vector.multi_reduction <add>, %1, %cst [1] : vector<4x256xf32> to vector<4xf32>
    %3 = vector.shape_cast %2 : vector<4xf32> to vector<4x1xf32>
    %c0_2 = arith.constant 0 : index
    %c0_3 = arith.constant 0 : index
    %c0_4 = arith.constant 0 : index
    %4 = vector.load %arg2[%c0_2, %c0_3, %c0_4] : memref<1x4x256xf32, #tpu.memory_space<vmem>>, vector<1x4x256xf32>
    %5 = vector.shape_cast %4 : vector<1x4x256xf32> to vector<4x256xf32>
    %cst_5 = arith.constant dense<0.000000e+00> : vector<4xf32>
    %6 = vector.multi_reduction <add>, %5, %cst_5 [1] : vector<4x256xf32> to vector<4xf32>
    %7 = vector.shape_cast %6 : vector<4xf32> to vector<4x1xf32>
    %8 = arith.addf %3, %7 : vector<4x1xf32>
    %cst_6 = arith.constant 3.906250e-03 : f32
    %9 = vector.broadcast %cst_6 : f32 to vector<4x1xf32>
    %10 = arith.mulf %8, %9 : vector<4x1xf32>
    %c0_7 = arith.constant 0 : index
    %c0_8 = arith.constant 0 : index
    %11 = vector.load %arg3[%c0_7, %c0_8] : memref<2x4xf32, #tpu.memory_space<vmem>>, vector<2x4xf32>
    %cst_9 = arith.constant dense<0.000000e+00> : vector<2x1xf32>
    %12 = tpu.matmul %11, %10, %cst_9 {dimension_numbers = #tpu.dot_dimension_numbers<[1], [0], [0], [1], [0, 0, 1, 1], [], []>} : vector<2x4xf32>, vector<4x1xf32>, vector<2x1xf32> -> vector<2x1xf32>
    %c0_10 = arith.constant 0 : index
    %c0_11 = arith.constant 0 : index
    %13 = vector.load %arg4[%c0_10, %c0_11] : memref<2x1xf32, #tpu.memory_space<vmem>>, vector<2x1xf32>
    %14 = arith.mulf %12, %13 : vector<2x1xf32>
    %c0_12 = arith.constant 0 : index
    %c0_13 = arith.constant 0 : index
    %15 = vector.load %arg5[%c0_12, %c0_13] : memref<2x1xf32, #tpu.memory_space<vmem>>, vector<2x1xf32>
    %16 = arith.addf %14, %15 : vector<2x1xf32>
    %cst_14 = arith.constant 0.000000e+00 : f32
    %17 = vector.broadcast %cst_14 : f32 to vector<2x1xf32>
    %18 = arith.maximumf %16, %17 : vector<2x1xf32>
    %c0_15 = arith.constant 0 : index
    %c0_16 = arith.constant 0 : index
    %c0_17 = arith.constant 0 : index
    %19 = vector.load %arg6[%c0_15, %c0_16, %c0_17] : memref<2x4x2xf32, #tpu.memory_space<vmem>>, vector<1x4x2xf32>
    %20 = vector.shape_cast %19 : vector<1x4x2xf32> to vector<4x2xf32>
    %cst_18 = arith.constant dense<0.000000e+00> : vector<4x1xf32>
    %21 = tpu.matmul %20, %18, %cst_18 {dimension_numbers = #tpu.dot_dimension_numbers<[1], [0], [0], [1], [0, 0, 1, 1], [], []>} : vector<4x2xf32>, vector<2x1xf32>, vector<4x1xf32> -> vector<4x1xf32>
    %c0_19 = arith.constant 0 : index
    %c0_20 = arith.constant 0 : index
    %c0_21 = arith.constant 0 : index
    %22 = vector.load %arg7[%c0_19, %c0_20, %c0_21] : memref<2x4x1xf32, #tpu.memory_space<vmem>>, vector<1x4x1xf32>
    %23 = vector.shape_cast %22 : vector<1x4x1xf32> to vector<4x1xf32>
    %24 = arith.addf %21, %23 : vector<4x1xf32>
    %c1 = arith.constant 1 : index
    %c0_22 = arith.constant 0 : index
    %c0_23 = arith.constant 0 : index
    %25 = vector.load %arg6[%c1, %c0_22, %c0_23] : memref<2x4x2xf32, #tpu.memory_space<vmem>>, vector<1x4x2xf32>
    %26 = vector.shape_cast %25 : vector<1x4x2xf32> to vector<4x2xf32>
    %cst_24 = arith.constant dense<0.000000e+00> : vector<4x1xf32>
    %27 = tpu.matmul %26, %18, %cst_24 {dimension_numbers = #tpu.dot_dimension_numbers<[1], [0], [0], [1], [0, 0, 1, 1], [], []>} : vector<4x2xf32>, vector<2x1xf32>, vector<4x1xf32> -> vector<4x1xf32>
    %c1_25 = arith.constant 1 : index
    %c0_26 = arith.constant 0 : index
    %c0_27 = arith.constant 0 : index
    %28 = vector.load %arg7[%c1_25, %c0_26, %c0_27] : memref<2x4x1xf32, #tpu.memory_space<vmem>>, vector<1x4x1xf32>
    %29 = vector.shape_cast %28 : vector<1x4x1xf32> to vector<4x1xf32>
    %30 = arith.addf %27, %29 : vector<4x1xf32>
    %31 = arith.maximumf %24, %30 : vector<4x1xf32>
    %32 = arith.subf %24, %31 : vector<4x1xf32>
    %33 = math.exp %32 : vector<4x1xf32>
    %34 = arith.subf %30, %31 : vector<4x1xf32>
    %35 = math.exp %34 : vector<4x1xf32>
    %36 = arith.addf %33, %35 : vector<4x1xf32>
    %37 = tpu.reciprocal %36 {approx = true} : vector<4x1xf32> -> vector<4x1xf32>
    %38 = arith.mulf %33, %37 : vector<4x1xf32>
    %39 = arith.mulf %35, %37 : vector<4x1xf32>
    %c0_28 = arith.constant 0 : index
    %c0_29 = arith.constant 0 : index
    %c0_30 = arith.constant 0 : index
    %40 = vector.load %arg1[%c0_28, %c0_29, %c0_30] : memref<1x4x256xf32, #tpu.memory_space<vmem>>, vector<1x4x256xf32>
    %41 = vector.shape_cast %40 : vector<1x4x256xf32> to vector<4x256xf32>
    %42 = vector.broadcast %38 : vector<4x1xf32> to vector<4x256xf32>
    %43 = arith.mulf %41, %42 : vector<4x256xf32>
    %c0_31 = arith.constant 0 : index
    %c0_32 = arith.constant 0 : index
    %c0_33 = arith.constant 0 : index
    %44 = vector.load %arg2[%c0_31, %c0_32, %c0_33] : memref<1x4x256xf32, #tpu.memory_space<vmem>>, vector<1x4x256xf32>
    %45 = vector.shape_cast %44 : vector<1x4x256xf32> to vector<4x256xf32>
    %46 = vector.broadcast %39 : vector<4x1xf32> to vector<4x256xf32>
    %47 = arith.mulf %45, %46 : vector<4x256xf32>
    %48 = arith.addf %43, %47 : vector<4x256xf32>
    %c0_34 = arith.constant 0 : index
    %c0_35 = arith.constant 0 : index
    %c0_36 = arith.constant 0 : index
    %49 = vector.load %arg8[%c0_34, %c0_35, %c0_36] : memref<1x4x256xf32, #tpu.memory_space<vmem>>, vector<1x4x256xf32>
    %50 = vector.shape_cast %49 : vector<1x4x256xf32> to vector<4x256xf32>
    %51 = vector.shape_cast %48 : vector<4x256xf32> to vector<1x4x256xf32>
    tpu.vector_store %arg8[%c0_34, %c0_35, %c0_36], %51 {strides = array<i32>} : memref<1x4x256xf32, #tpu.memory_space<vmem>>, vector<1x4x256xf32>,
    return
  }
  func.func @transform_0(%arg0: i32) -> (i32, i32, i32) {
    %c0_i32 = arith.constant 0 : i32
    %c0_i32_0 = arith.constant 0 : i32
    %c0_i32_1 = arith.constant 0 : i32
    return %arg0, %c0_i32, %c0_i32_0 : i32, i32, i32
  }
  func.func @transform_1(%arg0: i32) -> (i32, i32, i32) {
    %c0_i32 = arith.constant 0 : i32
    %c0_i32_0 = arith.constant 0 : i32
    %c0_i32_1 = arith.constant 0 : i32
    return %arg0, %c0_i32, %c0_i32_0 : i32, i32, i32
  }
  func.func @transform_2(%arg0: i32) -> (i32, i32) {
    %c0_i32 = arith.constant 0 : i32
    %c0_i32_0 = arith.constant 0 : i32
    %c0_i32_1 = arith.constant 0 : i32
    return %c0_i32, %c0_i32_0 : i32, i32
  }
  func.func @transform_3(%arg0: i32) -> (i32, i32) {
    %c0_i32 = arith.constant 0 : i32
    %c0_i32_0 = arith.constant 0 : i32
    %c0_i32_1 = arith.constant 0 : i32
    return %c0_i32, %c0_i32_0 : i32, i32
  }
  func.func @transform_4(%arg0: i32) -> (i32, i32) {
    %c0_i32 = arith.constant 0 : i32
    %c0_i32_0 = arith.constant 0 : i32
    %c0_i32_1 = arith.constant 0 : i32
    return %c0_i32, %c0_i32_0 : i32, i32
  }
  func.func @transform_5(%arg0: i32) -> (i32, i32, i32) {
    %c0_i32 = arith.constant 0 : i32
    %c0_i32_0 = arith.constant 0 : i32
    %c0_i32_1 = arith.constant 0 : i32
    %c0_i32_2 = arith.constant 0 : i32
    return %c0_i32, %c0_i32_0, %c0_i32_1 : i32, i32, i32
  }
  func.func @transform_6(%arg0: i32) -> (i32, i32, i32) {
    %c0_i32 = arith.constant 0 : i32
    %c0_i32_0 = arith.constant 0 : i32
    %c0_i32_1 = arith.constant 0 : i32
    %c0_i32_2 = arith.constant 0 : i32
    return %c0_i32, %c0_i32_0, %c0_i32_1 : i32, i32, i32
  }
  func.func @transform_7(%arg0: i32) -> (i32, i32, i32) {
    %c0_i32 = arith.constant 0 : i32
    %c0_i32_0 = arith.constant 0 : i32
    %c0_i32_1 = arith.constant 0 : i32
    return %arg0, %c0_i32, %c0_i32_0 : i32, i32, i32
  }
}

</mosaic_0001>

<llo_original>
// kernel: tpu_custom_call.1
$region0: #{tpu_custom_call.1}
  #allocation0 [shape = 'u32[]', space=smem, size = 0x4, offset = 0x4, fixed_abs, tag = 'smem constant byte address 0x4 - core index']
  #allocation1 [shape = 'u32[144,128]{1,0:T(1,128)}', space=vmem, size = 0x12000, scoped, tag = 'internal scratch']
  %s0 = inlined_call_operand.vmem [shape: f32[2,4,256], index: 0, kind: input, shape index: {}]
  %s1 = inlined_call_operand.vmem [shape: f32[2,4,256], index: 1, kind: input, shape index: {}]
  %s2 = inlined_call_operand.hbm [shape: f32[2,4], index: 2, kind: input, shape index: {}]
  %s3 = inlined_call_operand.vmem [shape: f32[2,1], index: 3, kind: input, shape index: {}]
  %s4 = inlined_call_operand.vmem [shape: f32[2,1], index: 4, kind: input, shape index: {}]
  %s5 = inlined_call_operand.vmem [shape: f32[2,4,2], index: 5, kind: input, shape index: {}]
  %s6 = inlined_call_operand.vmem [shape: f32[2,4,1], index: 6, kind: input, shape index: {}]
  %s7 = inlined_call_operand.hbm [shape: f32[2,4,256], index: 7, kind: output, shape index: {}]
  %s8 = sld [smem:[#allocation0]]
  $region65: #{tpu_custom_call.1} parent=0
    _
  %s10 = ssub.s32 1, %s8
  %s11 = scalar_select 0, %s10, %s8
  $region1: #{tpu_custom_call.1} parent=0
    #allocation2 [shape = 'u8[1024]{0}', space=vmem, size = 0x400, scoped, tag = 'input window, operand 2, single buffered']
    #allocation3 [shape = 's32[2]{0}', space=sflag, size = 0x8, scoped, tag = 'scoped memory for tpu_custom_call.1']
    #allocation4 [shape = 's32[2]{0}', space=sflag, size = 0x8, scoped, tag = 'scoped memory for tpu_custom_call.1']
    #allocation5 [shape = 'u8[8192]{0}', space=vmem, size = 0x2000, scoped, tag = 'output window, operand 0']
    %12 = vsyncpa [#allocation3], 0
    %13 = vsyncpa [#allocation4], 0
    %s14 = scalar_lea.sflag [#allocation4], 1
    %15 = vsyncpa %s14, 0
    loop: start=0, step=1, limit=4
    $region2: #{tpu_custom_call.1} parent=1 // loop_pre_header
      _
    $region3: #{tpu_custom_call.1} parent=1 // loop_header
      %s17 = sphi 0, %s21
      %p18 = scmp.ge.s32.totalorder %s17, 4
      %s27 = sphi 0, %s29
      %s30 = sphi 0, %s27
      %s31 = sphi 0, %s30
      %s47 = sphi 0, %s31
      %s53 = sphi 0, %s55
      %s56 = sphi 0, %s53
      %s57 = sphi 0, %s56
      %s73 = sphi 0, %s57
      %s77 = sphi 0, %s77
      %s79 = sphi 0, %s77
      %s80 = sphi 0, %s79
      %s94 = sphi 0, %s80
      %s98 = sphi 0, %s98
      %s100 = sphi 0, %s98
      %s101 = sphi 0, %s100
      %s115 = sphi 0, %s101
      %s119 = sphi 0, %s119
      %s121 = sphi 0, %s119
      %s122 = sphi 0, %s121
      %s136 = sphi 0, %s122
      %s140 = sphi 0, %s140
      %s142 = sphi 0, %s140
      %s143 = sphi 0, %s142
      %s157 = sphi 0, %s143
      %s161 = sphi 0, %s161
      %s163 = sphi 0, %s161
      %s164 = sphi 0, %s163
      %s178 = sphi 0, %s164
      %s184 = sphi 0, %s186
      %s187 = sphi 0, %s184
      %s188 = sphi 0, %s187
      %s204 = sphi 0, %s188
    $region4: #{tpu_custom_call.1} parent=1 // loop_header_branch
      %20 = sbr.rel (%p18) target = $region8
    $region5: #{tpu_custom_call.1} parent=1 // loop_body
      %s22 = ssub.s32 %s17, 1
      %s23 = ssub.s32 %s17, 2
      %s24 = sadd.s32 %s17, 1
      %s25 = ssub.s32 %s17, %s24
      %p26 = scmp.eq.s32.totalorder %s25, 0
      %s28 = sadd.s32 %s27, 1
      %s29 = scalar_select %p26, %s27, %s28
      %p32 = pneg %p26
      %p33 = scmp.eq.s32.totalorder %s17, 1
      %p34 = por %p32, %p33
      %p35 = scmp.ne.s32.totalorder %s27, %s30
      %p36 = scmp.eq.s32.totalorder %s17, 0
      %p37 = por %p35, %p36
      %p38 = scmp.ne.s32.totalorder %s27, %s30
      %p39 = scmp.eq.s32.totalorder %s22, 1
      %p40 = por %p38, %p39
      %p41 = scmp.ne.s32.totalorder %s30, %s31
      %p42 = scmp.eq.s32.totalorder %s22, 0
      %p43 = por %p41, %p42
      %p44 = scmp.ne.s32.totalorder %s30, %s31
      %p45 = scmp.eq.s32.totalorder %s23, 1
      %p46 = por %p44, %p45
      %p48 = scmp.ne.s32.totalorder %s31, %s47
      %p49 = scmp.eq.s32.totalorder %s23, 0
      %p50 = por %p48, %p49
      %s51 = ssub.s32 %s17, %s24
      %p52 = scmp.eq.s32.totalorder %s51, 0
      %s54 = sadd.s32 %s53, 1
      %s55 = scalar_select %p52, %s53, %s54
      %p58 = pneg %p52
      %p59 = scmp.eq.s32.totalorder %s17, 1
      %p60 = por %p58, %p59
      %p61 = scmp.ne.s32.totalorder %s53, %s56
      %p62 = scmp.eq.s32.totalorder %s17, 0
      %p63 = por %p61, %p62
      %p64 = scmp.ne.s32.totalorder %s53, %s56
      %p65 = scmp.eq.s32.totalorder %s22, 1
      %p66 = por %p64, %p65
      %p67 = scmp.ne.s32.totalorder %s56, %s57
      %p68 = scmp.eq.s32.totalorder %s22, 0
      %p69 = por %p67, %p68
      %p70 = scmp.ne.s32.totalorder %s56, %s57
      %p71 = scmp.eq.s32.totalorder %s23, 1
      %p72 = por %p70, %p71
      %p74 = scmp.ne.s32.totalorder %s57, %s73
      %p75 = scmp.eq.s32.totalorder %s23, 0
      %p76 = por %p74, %p75
      %s78 = sadd.s32 %s77, 1
      %p81 = scmp.eq.s32.totalorder %s17, 1
      %p82 = scmp.ne.s32.totalorder %s77, %s79
      %p83 = scmp.eq.s32.totalorder %s17, 0
      %p84 = por %p82, %p83
      %p85 = scmp.ne.s32.totalorder %s77, %s79
      %p86 = scmp.eq.s32.totalorder %s22, 1
      %p87 = por %p85, %p86
      %p88 = scmp.ne.s32.totalorder %s79, %s80
      %p89 = scmp.eq.s32.totalorder %s22, 0
      %p90 = por %p88, %p89
      %p91 = scmp.ne.s32.totalorder %s79, %s80
      %p92 = scmp.eq.s32.totalorder %s23, 1
      %p93 = por %p91, %p92
      %p95 = scmp.ne.s32.totalorder %s80, %s94
      %p96 = scmp.eq.s32.totalorder %s23, 0
      %p97 = por %p95, %p96
      %s99 = sadd.s32 %s98, 1
      %p102 = scmp.eq.s32.totalorder %s17, 1
      %p103 = scmp.ne.s32.totalorder %s98, %s100
      %p104 = scmp.eq.s32.totalorder %s17, 0
      %p105 = por %p103, %p104
      %p106 = scmp.ne.s32.totalorder %s98, %s100
      %p107 = scmp.eq.s32.totalorder %s22, 1
      %p108 = por %p106, %p107
      %p109 = scmp.ne.s32.totalorder %s100, %s101
      %p110 = scmp.eq.s32.totalorder %s22, 0
      %p111 = por %p109, %p110
      %p112 = scmp.ne.s32.totalorder %s100, %s101
      %p113 = scmp.eq.s32.totalorder %s23, 1
      %p114 = por %p112, %p113
      %p116 = scmp.ne.s32.totalorder %s101, %s115
      %p117 = scmp.eq.s32.totalorder %s23, 0
      %p118 = por %p116, %p117
      %s120 = sadd.s32 %s119, 1
      %p123 = scmp.eq.s32.totalorder %s17, 1
      %p124 = scmp.ne.s32.totalorder %s119, %s121
      %p125 = scmp.eq.s32.totalorder %s17, 0
      %p126 = por %p124, %p125
      %p127 = scmp.ne.s32.totalorder %s119, %s121
      %p128 = scmp.eq.s32.totalorder %s22, 1
      %p129 = por %p127, %p128
      %p130 = scmp.ne.s32.totalorder %s121, %s122
      %p131 = scmp.eq.s32.totalorder %s22, 0
      %p132 = por %p130, %p131
      %p133 = scmp.ne.s32.totalorder %s121, %s122
      %p134 = scmp.eq.s32.totalorder %s23, 1
      %p135 = por %p133, %p134
      %p137 = scmp.ne.s32.totalorder %s122, %s136
      %p138 = scmp.eq.s32.totalorder %s23, 0
      %p139 = por %p137, %p138
      %s141 = sadd.s32 %s140, 1
      %p144 = scmp.eq.s32.totalorder %s17, 1
      %p145 = scmp.ne.s32.totalorder %s140, %s142
      %p146 = scmp.eq.s32.totalorder %s17, 0
      %p147 = por %p145, %p146
      %p148 = scmp.ne.s32.totalorder %s140, %s142
      %p149 = scmp.eq.s32.totalorder %s22, 1
      %p150 = por %p148, %p149
      %p151 = scmp.ne.s32.totalorder %s142, %s143
      %p152 = scmp.eq.s32.totalorder %s22, 0
      %p153 = por %p151, %p152
      %p154 = scmp.ne.s32.totalorder %s142, %s143
      %p155 = scmp.eq.s32.totalorder %s23, 1
      %p156 = por %p154, %p155
      %p158 = scmp.ne.s32.totalorder %s143, %s157
      %p159 = scmp.eq.s32.totalorder %s23, 0
      %p160 = por %p158, %p159
      %s162 = sadd.s32 %s161, 1
      %p165 = scmp.eq.s32.totalorder %s17, 1
      %p166 = scmp.ne.s32.totalorder %s161, %s163
      %p167 = scmp.eq.s32.totalorder %s17, 0
      %p168 = por %p166, %p167
      %p169 = scmp.ne.s32.totalorder %s161, %s163
      %p170 = scmp.eq.s32.totalorder %s22, 1
      %p171 = por %p169, %p170
      %p172 = scmp.ne.s32.totalorder %s163, %s164
      %p173 = scmp.eq.s32.totalorder %s22, 0
      %p174 = por %p172, %p173
      %p175 = scmp.ne.s32.totalorder %s163, %s164
      %p176 = scmp.eq.s32.totalorder %s23, 1
      %p177 = por %p175, %p176
      %p179 = scmp.ne.s32.totalorder %s164, %s178
      %p180 = scmp.eq.s32.totalorder %s23, 0
      %p181 = por %p179, %p180
      %s182 = ssub.s32 %s17, %s24
      %p183 = scmp.eq.s32.totalorder %s182, 0
      %s185 = sadd.s32 %s184, 1
      %s186 = scalar_select %p183, %s184, %s185
      %p189 = pneg %p183
      %p190 = scmp.eq.s32.totalorder %s17, 1
      %p191 = por %p189, %p190
      %p192 = scmp.ne.s32.totalorder %s184, %s187
      %p193 = scmp.eq.s32.totalorder %s17, 0
      %p194 = por %p192, %p193
      %p195 = scmp.ne.s32.totalorder %s184, %s187
      %p196 = scmp.eq.s32.totalorder %s22, 1
      %p197 = por %p195, %p196
      %p198 = scmp.ne.s32.totalorder %s187, %s188
      %p199 = scmp.eq.s32.totalorder %s22, 0
      %p200 = por %p198, %p199
      %p201 = scmp.ne.s32.totalorder %s187, %s188
      %p202 = scmp.eq.s32.totalorder %s23, 1
      %p203 = por %p201, %p202
      %p205 = scmp.ne.s32.totalorder %s188, %s204
      %p206 = scmp.eq.s32.totalorder %s23, 0
      %p207 = por %p205, %p206
      %p208 = scmp.le.s32.totalorder 1, %s17
      %p209 = scmp.lt.s32.totalorder %s17, 3
      %p210 = pnand %p208, %p209
      %p211 = pneg %p210
      // Predicated region
      $region9: #{tpu_custom_call.1} parent=5 // pred_check
        _
      $region10: #{tpu_custom_call.1} parent=5 // pred_check_branch
        %213 = sbr.rel (%p210) target = $region12
      $region11: #{tpu_custom_call.1} parent=5 // pred_region
        %s214 = ssub.s32 %s17, 1
        // Predicated region
        $region13: #{tpu_custom_call.1} parent=11 // pred_check
          %p215 = pneg %p90
        $region14: #{tpu_custom_call.1} parent=11 // pred_check_branch
          %217 = sbr.rel (%p215) target = $region16
        $region15: #{tpu_custom_call.1} parent=11 // pred_region
          %s219 = ssub.s32 32, 32
          %220 = vsyncadd [#allocation3], %s219
          %s222 = sshll.u32 [#allocation2], 4
          %s223 = int_to_ptr.vmem [resolvable:$true] %s222
          %225 = dma.hbm_to_vmem [thread:$0]  %s2, 32, %s223, [#allocation3]
        $region16: #{tpu_custom_call.1} parent=11 // pred_fallthru
          _
        // Predicated region
        $region17: #{tpu_custom_call.1} parent=11 // pred_check
          %p226 = pneg %p111
        $region18: #{tpu_custom_call.1} parent=11 // pred_check_branch
          %228 = sbr.rel (%p226) target = $region20
        $region19: #{tpu_custom_call.1} parent=11 // pred_region
          _
        $region20: #{tpu_custom_call.1} parent=11 // pred_fallthru
          _
        // Predicated region
        $region21: #{tpu_custom_call.1} parent=11 // pred_check
          %p229 = pneg %p132
        $region22: #{tpu_custom_call.1} parent=11 // pred_check_branch
          %231 = sbr.rel (%p229) target = $region24
        $region23: #{tpu_custom_call.1} parent=11 // pred_region
          _
        $region24: #{tpu_custom_call.1} parent=11 // pred_fallthru
          _
        // Predicated region
        $region25: #{tpu_custom_call.1} parent=11 // pred_check
          %p232 = pneg %p153
        $region26: #{tpu_custom_call.1} parent=11 // pred_check_branch
          %234 = sbr.rel (%p232) target = $region28
        $region27: #{tpu_custom_call.1} parent=11 // pred_region
          _
        $region28: #{tpu_custom_call.1} parent=11 // pred_fallthru
          _
        // Predicated region
        $region29: #{tpu_custom_call.1} parent=11 // pred_check
          %p235 = pneg %p174
        $region30: #{tpu_custom_call.1} parent=11 // pred_check_branch
          %237 = sbr.rel (%p235) target = $region32
        $region31: #{tpu_custom_call.1} parent=11 // pred_region
          _
        $region32: #{tpu_custom_call.1} parent=11 // pred_fallthru
          _
      $region12: #{tpu_custom_call.1} parent=5 // pred_fallthru
        _
      %p238 = scmp.lt.s32.totalorder %s17, 2
      // Predicated region
      $region33: #{tpu_custom_call.1} parent=5 // pred_check
        %p239 = pneg %p238
      $region34: #{tpu_custom_call.1} parent=5 // pred_check_branch
        %241 = sbr.rel (%p239) target = $region36
      $region35: #{tpu_custom_call.1} parent=5 // pred_region
        // Predicated region
        $region37: #{tpu_custom_call.1} parent=35 // pred_check
          %p242 = pneg %p37
        $region38: #{tpu_custom_call.1} parent=35 // pred_check_branch
          %244 = sbr.rel (%p242) target = $region40
        $region39: #{tpu_custom_call.1} parent=35 // pred_region
          %p245 = scmp.lt.s32.totalorder %s17, 1
          %s246 = scalar_select %p245, %s17, 1
          %s247 = smul.addr %s246, 2
          %s248 = smul.addr %s247, 4
          %s249 = scalar_lea.vmem %s0, %s248
        $region40: #{tpu_custom_call.1} parent=35 // pred_fallthru
          _
        // Predicated region
        $region41: #{tpu_custom_call.1} parent=35 // pred_check
          %p250 = pneg %p63
        $region42: #{tpu_custom_call.1} parent=35 // pred_check_branch
          %252 = sbr.rel (%p250) target = $region44
        $region43: #{tpu_custom_call.1} parent=35 // pred_region
          %p253 = scmp.lt.s32.totalorder %s17, 1
          %s254 = scalar_select %p253, %s17, 1
          %s255 = smul.addr %s254, 2
          %s256 = smul.addr %s255, 4
          %s257 = scalar_lea.vmem %s1, %s256
        $region44: #{tpu_custom_call.1} parent=35 // pred_fallthru
          _
      $region36: #{tpu_custom_call.1} parent=5 // pred_fallthru
        _
      %p258 = scmp.le.s32.totalorder 1, %s17
      %p259 = scmp.lt.s32.totalorder %s17, 3
      %p260 = pnand %p258, %p259
      %p261 = pneg %p260
      // Predicated region
      $region45: #{tpu_custom_call.1} parent=5 // pred_check
        _
      $region46: #{tpu_custom_call.1} parent=5 // pred_check_branch
        %263 = sbr.rel (%p260) target = $region48
      $region47: #{tpu_custom_call.1} parent=5 // pred_region
        %s264 = ssub.s32 %s17, 1
        // Predicated region
        $region49: #{tpu_custom_call.1} parent=47 // pred_check
          %p265 = pneg %p90
        $region50: #{tpu_custom_call.1} parent=47 // pred_check_branch
          %267 = sbr.rel (%p265) target = $region52
        $region51: #{tpu_custom_call.1} parent=47 // pred_region
          %268 = dma.done [#allocation3], 32
        $region52: #{tpu_custom_call.1} parent=47 // pred_fallthru
          _
        %p269 = scmp.lt.s32.totalorder %s22, 1
        %s270 = scalar_select %p269, %s22, 1
        %s271 = smul.addr %s270, 2
        %s272 = smul.addr %s271, 4
        %s273 = scalar_lea.vmem %s0, %s272
        %p274 = pneg %p43
        %p275 = pneg %p40
        %p276 = scmp.lt.s32.totalorder %s22, 1
        %s277 = scalar_select %p276, %s22, 1
        %s278 = smul.addr %s277, 2
        %s279 = smul.addr %s278, 4
        %s280 = scalar_lea.vmem %s1, %s279
        %p281 = pneg %p69
        %p282 = pneg %p66
        %p283 = pneg %p90
        %p284 = pneg %p87
        %p285 = pneg %p111
        %p286 = pneg %p108
        %p287 = pneg %p132
        %p288 = pneg %p129
        %p289 = pneg %p153
        %p290 = pneg %p150
        %p291 = pneg %p174
        %p292 = pneg %p171
        %p293 = pneg %p200
        %p294 = pneg %p197
        %s295 = sand.u32 %s187, 1
        %s296 = scalar_lea.sflag [#allocation4], %s295
        %s297 = sand.u32 %s187, 1
        %s298 = smul.addr %s297, 8
        %s299 = scalar_lea.vmem [#allocation5], %s298
        %p300 = scmp.lt.s32.totalorder %s22, 1
        %s301 = scalar_select %p300, %s22, 1
        %s302 = smul.addr %s301, 2
        %s303 = smul.addr %s302, 4
        %s304 = scalar_lea.vmem %s0, %s303
        %p305 = scmp.lt.s32.totalorder %s22, 1
        %s306 = scalar_select %p305, %s22, 1
        %s307 = smul.addr %s306, 2
        %s308 = smul.addr %s307, 4
        %s309 = scalar_lea.vmem %s1, %s308
        %v310 = vld [vmem:[%s304] sm:$0xff]
        %v312 = vcombine.high %v310, %v310
        %vm314 = vcmask 1043456
        %v315 = vsel %vm314, %v310, 0.0
        %v316 = vsel %vm314, %v312, 0.0
        %v317 = vadd.f32 %v315, %v316
        %318 = vadd.xlane.f32.xlu0 %v317
        %v319 = vpop.xlane.xlu0 %318
        %v320 = vld [vmem:[%s309] sm:$0xff]
        %v322 = vcombine.high %v320, %v320
        %v324 = vsel %vm314, %v320, 0.0
        %v325 = vsel %vm314, %v322, 0.0
        %v326 = vadd.f32 %v324, %v325
        %327 = vadd.xlane.f32.xlu0 %v326
        %v328 = vpop.xlane.xlu0 %327
        %v329 = vadd.f32 %v319, %v328
        %v330 = vmul.f32 %v329, 0.00390625
        %v331 = vld [vmem:[#allocation2] sm:$0x3]
        %vm332 = vcmask 31744
        %v334 = vsel %vm332, %v331, 0
        %v337 = vsel %vm314, %v330, 0
        %339 = vmatprep.subr.mxu0 0.0
        %340 = vmatpush1.msra.mxu0 %v337
        %341 = vmatprep.subr.mxu0 0.0
        %342 = vmatpush1.msra.mxu0 0.0
        %343 = vmatprep.subr.mxu0 0.0
        %344 = vmatpush1.msra.mxu0 0.0
        %345 = vmatprep.subr.mxu0 0.0
        %346 = vmatpush1.msra.mxu0 0.0
        %347 = vmatprep.subr.mxu0 0.0
        %348 = vmatpush1.msra.mxu0 0.0
        %349 = vmatprep.subr.mxu0 0.0
        %350 = vmatpush1.msra.mxu0 0.0
        %351 = vmatprep.subr.mxu0 0.0
        %352 = vmatpush1.msra.mxu0 0.0
        %353 = vmatprep.subr.mxu0 0.0
        %354 = vmatpush1.msra.mxu0 0.0
        %355 = vmatprep.subr.mxu0 0.0
        %356 = vmatpush1.msra.mxu0 0.0
        %357 = vmatprep.subr.mxu0 0.0
        %358 = vmatpush1.msra.mxu0 0.0
        %359 = vmatprep.subr.mxu0 0.0
        %360 = vmatpush1.msra.mxu0 0.0
        %361 = vmatprep.subr.mxu0 0.0
        %362 = vmatpush1.msra.mxu0 0.0
        %363 = vmatprep.subr.mxu0 0.0
        %364 = vmatpush1.msra.mxu0 0.0
        %365 = vmatprep.subr.mxu0 0.0
        %366 = vmatpush1.msra.mxu0 0.0
        %367 = vmatprep.subr.mxu0 0.0
        %368 = vmatpush1.msra.mxu0 0.0
        %369 = vmatprep.subr.mxu0 0.0
        %370 = vmatpush1.msra.mxu0 0.0
        %371 = vmatprep.subr.mxu0 0.0
        %372 = vmatpush1.msra.mxu0 0.0
        %373 = vmatprep.subr.mxu0 0.0
        %374 = vmatpush1.msra.mxu0 0.0
        %375 = vmatprep.subr.mxu0 0.0
        %376 = vmatpush1.msra.mxu0 0.0
        %377 = vmatprep.subr.mxu0 0.0
        %378 = vmatpush1.msra.mxu0 0.0
        %379 = vmatprep.subr.mxu0 0.0
        %380 = vmatpush1.msra.mxu0 0.0
        %381 = vmatprep.subr.mxu0 0.0
        %382 = vmatpush1.msra.mxu0 0.0
        %383 = vmatprep.subr.mxu0 0.0
        %384 = vmatpush1.msra.mxu0 0.0
        %385 = vmatprep.subr.mxu0 0.0
        %386 = vmatpush1.msra.mxu0 0.0
        %387 = vmatprep.subr.mxu0 0.0
        %388 = vmatpush1.msra.mxu0 0.0
        %389 = vmatprep.subr.mxu0 0.0
        %390 = vmatpush1.msra.mxu0 0.0
        %391 = vmatprep.subr.mxu0 0.0
        %392 = vmatpush1.msra.mxu0 0.0
        %393 = vmatprep.subr.mxu0 0.0
        %394 = vmatpush1.msra.mxu0 0.0
        %395 = vmatprep.subr.mxu0 0.0
        %396 = vmatpush1.msra.mxu0 0.0
        %397 = vmatprep.subr.mxu0 0.0
        %398 = vmatpush1.msra.mxu0 0.0
        %399 = vmatprep.subr.mxu0 0.0
        %400 = vmatpush1.msra.mxu0 0.0
        %401 = vmatprep.subr.mxu0 0.0
        %402 = vmatpush1.msra.mxu0 0.0
        %403 = vmatprep.mubr.f32.mxu0 0.0
        %404 = vmatmul.mubr.f32.gmra.mrb[0].mxu0 %v334
        %v405 = vpop.f32.mrb[0].mxu0
        %v406 = vadd.f32 0.0, %v405
        %v407 = vpop.f32.mrb[0].mxu0
        %408 = vdwg.mxu0
        %v409 = vld [vmem:[%s3] sm:$0x3]
        %v410 = vmul.f32 %v406, %v409
        %v411 = vld [vmem:[%s4] sm:$0x3]
        %v412 = vadd.f32 %v410, %v411
        %v413 = vmax.f32 %v412, 0.0
        %v414 = vld [vmem:[%s5] sm:$0xf]
        %v415 = vld [vmem:[%s6] sm:$0xf]
        %vm416 = vcmask 15360
        %v418 = vsel %vm416, %v414, 0
        %vm420 = vcmask 1041408
        %v422 = vsel %vm420, %v413, 0
        %424 = vmatprep.subr.mxu0 0.0
        %425 = vmatpush1.msra.mxu0 %v422
        %426 = vmatprep.subr.mxu0 0.0
        %427 = vmatpush1.msra.mxu0 0.0
        %428 = vmatprep.subr.mxu0 0.0
        %429 = vmatpush1.msra.mxu0 0.0
        %430 = vmatprep.subr.mxu0 0.0
        %431 = vmatpush1.msra.mxu0 0.0
        %432 = vmatprep.subr.mxu0 0.0
        %433 = vmatpush1.msra.mxu0 0.0
        %434 = vmatprep.subr.mxu0 0.0
        %435 = vmatpush1.msra.mxu0 0.0
        %436 = vmatprep.subr.mxu0 0.0
        %437 = vmatpush1.msra.mxu0 0.0
        %438 = vmatprep.subr.mxu0 0.0
        %439 = vmatpush1.msra.mxu0 0.0
        %440 = vmatprep.subr.mxu0 0.0
        %441 = vmatpush1.msra.mxu0 0.0
        %442 = vmatprep.subr.mxu0 0.0
        %443 = vmatpush1.msra.mxu0 0.0
        %444 = vmatprep.subr.mxu0 0.0
        %445 = vmatpush1.msra.mxu0 0.0
        %446 = vmatprep.subr.mxu0 0.0
        %447 = vmatpush1.msra.mxu0 0.0
        %448 = vmatprep.subr.mxu0 0.0
        %449 = vmatpush1.msra.mxu0 0.0
        %450 = vmatprep.subr.mxu0 0.0
        %451 = vmatpush1.msra.mxu0 0.0
        %452 = vmatprep.subr.mxu0 0.0
        %453 = vmatpush1.msra.mxu0 0.0
        %454 = vmatprep.subr.mxu0 0.0
        %455 = vmatpush1.msra.mxu0 0.0
        %456 = vmatprep.subr.mxu0 0.0
        %457 = vmatpush1.msra.mxu0 0.0
        %458 = vmatprep.subr.mxu0 0.0
        %459 = vmatpush1.msra.mxu0 0.0
        %460 = vmatprep.subr.mxu0 0.0
        %461 = vmatpush1.msra.mxu0 0.0
        %462 = vmatprep.subr.mxu0 0.0
        %463 = vmatpush1.msra.mxu0 0.0
        %464 = vmatprep.subr.mxu0 0.0
        %465 = vmatpush1.msra.mxu0 0.0
        %466 = vmatprep.subr.mxu0 0.0
        %467 = vmatpush1.msra.mxu0 0.0
        %468 = vmatprep.subr.mxu0 0.0
        %469 = vmatpush1.msra.mxu0 0.0
        %470 = vmatprep.subr.mxu0 0.0
        %471 = vmatpush1.msra.mxu0 0.0
        %472 = vmatprep.subr.mxu0 0.0
        %473 = vmatpush1.msra.mxu0 0.0
        %474 = vmatprep.subr.mxu0 0.0
        %475 = vmatpush1.msra.mxu0 0.0
        %476 = vmatprep.subr.mxu0 0.0
        %477 = vmatpush1.msra.mxu0 0.0
        %478 = vmatprep.subr.mxu0 0.0
        %479 = vmatpush1.msra.mxu0 0.0
        %480 = vmatprep.subr.mxu0 0.0
        %481 = vmatpush1.msra.mxu0 0.0
        %482 = vmatprep.subr.mxu0 0.0
        %483 = vmatpush1.msra.mxu0 0.0
        %484 = vmatprep.subr.mxu0 0.0
        %485 = vmatpush1.msra.mxu0 0.0
        %486 = vmatprep.subr.mxu0 0.0
        %487 = vmatpush1.msra.mxu0 0.0
        %488 = vmatprep.mubr.f32.mxu0 0.0
        %489 = vmatmul.mubr.f32.gmra.mrb[0].mxu0 %v418
        %v490 = vpop.f32.mrb[0].mxu0
        %v491 = vadd.f32 %v415, %v490
        %v492 = vpop.f32.mrb[0].mxu0
        %493 = vdwg.mxu0
        %s494 = scalar_lea.vmem %s5, 4
        %v495 = vld [vmem:[%s494] sm:$0xf]
        %s496 = scalar_lea.vmem %s6, 4
        %v497 = vld [vmem:[%s496] sm:$0xf]
        %v499 = vsel %vm416, %v495, 0
        %501 = vmatprep.subr.mxu0 0.0
        %502 = vmatpush1.msra.mxu0 %v422
        %503 = vmatprep.subr.mxu0 0.0
        %504 = vmatpush1.msra.mxu0 0.0
        %505 = vmatprep.subr.mxu0 0.0
        %506 = vmatpush1.msra.mxu0 0.0
        %507 = vmatprep.subr.mxu0 0.0
        %508 = vmatpush1.msra.mxu0 0.0
        %509 = vmatprep.subr.mxu0 0.0
        %510 = vmatpush1.msra.mxu0 0.0
        %511 = vmatprep.subr.mxu0 0.0
        %512 = vmatpush1.msra.mxu0 0.0
        %513 = vmatprep.subr.mxu0 0.0
        %514 = vmatpush1.msra.mxu0 0.0
        %515 = vmatprep.subr.mxu0 0.0
        %516 = vmatpush1.msra.mxu0 0.0
        %517 = vmatprep.subr.mxu0 0.0
        %518 = vmatpush1.msra.mxu0 0.0
        %519 = vmatprep.subr.mxu0 0.0
        %520 = vmatpush1.msra.mxu0 0.0
        %521 = vmatprep.subr.mxu0 0.0
        %522 = vmatpush1.msra.mxu0 0.0
        %523 = vmatprep.subr.mxu0 0.0
        %524 = vmatpush1.msra.mxu0 0.0
        %525 = vmatprep.subr.mxu0 0.0
        %526 = vmatpush1.msra.mxu0 0.0
        %527 = vmatprep.subr.mxu0 0.0
        %528 = vmatpush1.msra.mxu0 0.0
        %529 = vmatprep.subr.mxu0 0.0
        %530 = vmatpush1.msra.mxu0 0.0
        %531 = vmatprep.subr.mxu0 0.0
        %532 = vmatpush1.msra.mxu0 0.0
        %533 = vmatprep.subr.mxu0 0.0
        %534 = vmatpush1.msra.mxu0 0.0
        %535 = vmatprep.subr.mxu0 0.0
        %536 = vmatpush1.msra.mxu0 0.0
        %537 = vmatprep.subr.mxu0 0.0
        %538 = vmatpush1.msra.mxu0 0.0
        %539 = vmatprep.subr.mxu0 0.0
        %540 = vmatpush1.msra.mxu0 0.0
        %541 = vmatprep.subr.mxu0 0.0
        %542 = vmatpush1.msra.mxu0 0.0
        %543 = vmatprep.subr.mxu0 0.0
        %544 = vmatpush1.msra.mxu0 0.0
        %545 = vmatprep.subr.mxu0 0.0
        %546 = vmatpush1.msra.mxu0 0.0
        %547 = vmatprep.subr.mxu0 0.0
        %548 = vmatpush1.msra.mxu0 0.0
        %549 = vmatprep.subr.mxu0 0.0
        %550 = vmatpush1.msra.mxu0 0.0
        %551 = vmatprep.subr.mxu0 0.0
        %552 = vmatpush1.msra.mxu0 0.0
        %553 = vmatprep.subr.mxu0 0.0
        %554 = vmatpush1.msra.mxu0 0.0
        %555 = vmatprep.subr.mxu0 0.0
        %556 = vmatpush1.msra.mxu0 0.0
        %557 = vmatprep.subr.mxu0 0.0
        %558 = vmatpush1.msra.mxu0 0.0
        %559 = vmatprep.subr.mxu0 0.0
        %560 = vmatpush1.msra.mxu0 0.0
        %561 = vmatprep.subr.mxu0 0.0
        %562 = vmatpush1.msra.mxu0 0.0
        %563 = vmatprep.subr.mxu0 0.0
        %564 = vmatpush1.msra.mxu0 0.0
        %565 = vmatprep.mubr.f32.mxu0 0.0
        %566 = vmatmul.mubr.f32.gmra.mrb[0].mxu0 %v499
        %v567 = vpop.f32.mrb[0].mxu0
        %v568 = vadd.f32 %v497, %v567
        %v569 = vpop.f32.mrb[0].mxu0
        %570 = vdwg.mxu0
        %v571 = vmax.f32 %v491, %v568
        %v572 = vsub.f32 %v491, %v571
        %v573 = vmul.f32 %v572, 1.442695
        %v574 = vpow.pop %v573
        %v575 = vsub.f32 %v568, %v571
        %v576 = vmul.f32 %v575, 1.442695
        %v577 = vpow.pop %v576
        %v578 = vadd.f32 %v574, %v577
        %v579 = vrcp.pop %v578
        %v580 = vmul.f32 %v574, %v579
        %v581 = vmul.f32 %v577, %v579
        %583 = vset.pattern.permute.xlu0 0
        %584 = vperm.xlu0 %583, %v580
        %v585 = vpop.permute.xlu0 %584
        %v587 = vunpack.c.l.s4 839922192
        %v588 = vunpack.c.0.s8 %v587
        %v589 = vlaneseq
        %v590 = vshrl.u32 %v589, 7
        %v591 = vsub.s32 %v588, %v590
        %v592 = vrot.slane %v585, %v591
        %v594 = vmul.f32 %v310, %v592
        %596 = vset.pattern.permute.xlu0 0
        %597 = vperm.xlu0 %596, %v581
        %v598 = vpop.permute.xlu0 %597
        %v600 = vunpack.c.l.s4 839922192
        %v601 = vunpack.c.0.s8 %v600
        %v602 = vlaneseq
        %v603 = vshrl.u32 %v602, 7
        %v604 = vsub.s32 %v601, %v603
        %v605 = vrot.slane %v598, %v604
        %v607 = vmul.f32 %v320, %v605
        %v608 = vadd.f32 %v594, %v607
        %609 = vst [vmem:[%s299] sm:$0xff] %v608
        %s610 = sand.u32 %s187, 1
        %s611 = scalar_lea.sflag [#allocation4], %s610
        %s612 = sand.u32 %s187, 1
        %s613 = smul.addr %s612, 8
        %s614 = scalar_lea.vmem [#allocation5], %s613
        // Predicated region
        $region53: #{tpu_custom_call.1} parent=47 // pred_check
          %p615 = pneg %p197
        $region54: #{tpu_custom_call.1} parent=47 // pred_check_branch
          %617 = sbr.rel (%p615) target = $region56
        $region55: #{tpu_custom_call.1} parent=47 // pred_region
          %s619 = ssub.s32 128, 128
          %620 = vsyncadd %s611, %s619
          %s621 = smul.addr %s22, 2
          %s622 = smul.addr %s621, 64
          %s623 = scalar_lea.hbm %s7, %s622
          %s625 = sshll.u32 %s614, 4
          %s626 = int_to_ptr.vmem [resolvable:$true] %s625
          %628 = dma.vmem_to_hbm [thread:$0]  %s626, 128, %s623, %s611
        $region56: #{tpu_custom_call.1} parent=47 // pred_fallthru
          _
      $region48: #{tpu_custom_call.1} parent=5 // pred_fallthru
        _
      %p629 = scmp.le.s32.totalorder 2, %s17
      // Predicated region
      $region57: #{tpu_custom_call.1} parent=5 // pred_check
        %p630 = pneg %p629
      $region58: #{tpu_custom_call.1} parent=5 // pred_check_branch
        %632 = sbr.rel (%p630) target = $region60
      $region59: #{tpu_custom_call.1} parent=5 // pred_region
        %s633 = ssub.s32 %s17, 2
        // Predicated region
        $region61: #{tpu_custom_call.1} parent=59 // pred_check
          %p634 = pneg %p203
        $region62: #{tpu_custom_call.1} parent=59 // pred_check_branch
          %636 = sbr.rel (%p634) target = $region64
        $region63: #{tpu_custom_call.1} parent=59 // pred_region
          %s637 = sand.u32 %s188, 1
          %s638 = scalar_lea.sflag [#allocation4], %s637
          %s639 = sand.u32 %s188, 1
          %s640 = smul.addr %s639, 8
          %s641 = scalar_lea.vmem [#allocation5], %s640
          %642 = dma.done %s638, 128
        $region64: #{tpu_custom_call.1} parent=59 // pred_fallthru
          _
      $region60: #{tpu_custom_call.1} parent=5 // pred_fallthru
        _
    $region6: #{tpu_custom_call.1} parent=1 // loop_footer
      %s21 = sadd.s32 1, %s17
    $region7: #{tpu_custom_call.1} parent=1 // loop_footer_branch
      %16 = sbr.rel target = $region3
    $region8: #{tpu_custom_call.1} parent=1 // loop_exit
      _
    %643 = vsyncpa [#allocation3], 1
    %s644 = scalar_lea.sflag [#allocation3], 1
    %645 = vsyncpa %s644, 1
    %646 = vsyncpa [#allocation4], 1
    %s647 = scalar_lea.sflag [#allocation4], 1
    %648 = vsyncpa %s647, 1

</llo_original>
